<compile_context>
chip_gen: v7x
topology: tpu7x:2x2x1
jax: 0.10.0
libtpu: 0.0.40
codegen_flags: <defaults>
</compile_context>

<pallas_src>
import functools
from typing import NamedTuple

import numpy as np
import jax
import jax.numpy as jnp
from jax.experimental import pallas as pl
from jax.experimental.pallas import tpu as pltpu


def _round_up(x, m):
    return (x + m - 1) // m * m


# --------------------------------------------------------------------------
# One-time parameter preparation (hoisted out of the per-call wrapper).
# --------------------------------------------------------------------------
class PreparedParams(NamedTuple):
    w1: jax.Array    # (D_in, H)     weight_dtype (PyTorch W1.T)
    b1: jax.Array    # (1, H)        f32
    w2: jax.Array    # (H, D_out_p)  weight_dtype (PyTorch W2.T, lane-padded)
    b2: jax.Array    # (1, D_out_p)  f32
    d_out: int       # un-padded output features


def prepare_params(w1, b1, w2, b2, *, weight_dtype=jnp.bfloat16):
    """Cast / pad / reshape weights ONCE (do not call per step).

    Weights are (in_features, out_features), i.e. the transpose of PyTorch's
    nn.Linear.weight.  w2/b2 output features are padded up to a multiple of
    128 so the kernel's output stores stay lane-dense (unmasked vst).
    """
    d_in, h = w1.shape
    h2, d_out = w2.shape
    assert h2 == h, "w1/w2 hidden dims do not match"
    d_out_p = _round_up(d_out, 128)
    if d_out_p != d_out:
        w2 = jnp.pad(w2, ((0, 0), (0, d_out_p - d_out)))
        b2 = jnp.pad(b2, (0, d_out_p - d_out))
    return PreparedParams(
        w1=w1.astype(weight_dtype),
        b1=b1.reshape(1, h).astype(jnp.float32),
        w2=w2.astype(weight_dtype),
        b2=b2.reshape(1, d_out_p).astype(jnp.float32),
        d_out=int(d_out),
    )


# --------------------------------------------------------------------------
# Kernel
# --------------------------------------------------------------------------
def _make_kernel(act_in_bf16):
    def kernel(t_ref, w1_ref, b1_ref, w2_ref, b2_ref, o_ref):
        # linear_1: t kept in f32 (K = D_in is tiny, MXU underutilized, so the
        # f32 path is free and much more accurate); f32 accumulation + bias.
        h = jnp.dot(t_ref[...], w1_ref[...],
                    preferred_element_type=jnp.float32) + b1_ref[...]
        # SiLU: bf16 on chips with a bf16 VPU/EUP, f32 otherwise.
        if act_in_bf16:
            hb = h.astype(jnp.bfloat16)
            act = hb * jax.nn.sigmoid(hb)
        else:
            act = h * jax.nn.sigmoid(h)
        # linear_2: cast activation to the weight dtype for the MXU, f32 acc.
        out = jnp.dot(act.astype(w2_ref.dtype), w2_ref[...],
                      preferred_element_type=jnp.float32) + b2_ref[...]
        o_ref[...] = out.astype(o_ref.dtype)
    return kernel


# --------------------------------------------------------------------------
# Hardware detection (generation-aware tiling / VMEM limit).
# --------------------------------------------------------------------------
@functools.lru_cache(maxsize=None)
def _hw_info():
    vmem_capacity = 64 * 1024 * 1024  # conservative default (v7x per-TC)
    try:
        info = pltpu.get_tpu_info()
        vmem_capacity = int(getattr(info, "vmem_capacity_bytes", vmem_capacity))
    except Exception:
        pass
    kind = ""
    try:
        kind = jax.devices()[0].device_kind.lower()
    except Exception:
        pass
    two_tc = "v7" in kind          # v7x: 2 TensorCores per chip
    is_v5 = "v5" in kind           # no bf16 VPU/EUP -> f32 SiLU
    return vmem_capacity, two_tc, is_v5


def _choose_tiling(batch, tile_b, two_tc):
    """Balanced tiles: padding per tile < 8 rows; >=2 even tiles on v7x."""
    if tile_b is None:
        tile_b = 512 if two_tc else 1024
    num_tiles = pl.cdiv(batch, tile_b)
    if two_tc and batch >= 256:
        if num_tiles < 2:
            num_tiles = 2
        if num_tiles % 2:
            num_tiles += 1
    tile = _round_up(pl.cdiv(batch, num_tiles), 8)
    return tile, num_tiles, num_tiles * tile


# --------------------------------------------------------------------------
# Wrapper
# --------------------------------------------------------------------------
def timestep_embedding(t, params: PreparedParams, *, tile_b=None, out_dtype=None):
    """Fused Linear -> SiLU -> Linear.

    t:      (B, D_in) float32
    params: output of prepare_params() (called once at init).
    Returns (B, D_out) in out_dtype (default: t.dtype).
    """
    B, D_in = t.shape
    w1, b1, w2, b2, D_out = params
    H = w1.shape[1]
    D_out_p = w2.shape[1]
    out_dtype = t.dtype if out_dtype is None else out_dtype
    out_isize = np.dtype(out_dtype).itemsize
    t_isize = np.dtype(t.dtype).itemsize

    vmem_capacity, two_tc, is_v5 = _hw_info()
    tile, num_tiles, B_p = _choose_tiling(B, tile_b, two_tc)
    t_p = jnp.pad(t, ((0, B_p - B), (0, 0))) if B_p != B else t

    kernel = _make_kernel(act_in_bf16=not is_v5)

    weight_bytes = (w1.size * w1.dtype.itemsize + w2.size * w2.dtype.itemsize
                    + b1.size * 4 + b2.size * 4)
    cost = pl.CostEstimate(
        flops=2 * B_p * (D_in * H + H * D_out_p),
        transcendentals=B_p * H,
        bytes_accessed=(B_p * D_in * t_isize + weight_bytes
                        + B_p * D_out_p * out_isize),
    )

    def _vmem_limit(resident_bytes):
        # Leave headroom; respect the detected physical capacity.
        cap = (int(vmem_capacity * 0.85) if vmem_capacity <= 64 * 1024 * 1024
               else 100 * 1024 * 1024)
        need = int(resident_bytes * 1.25) + 2 * 1024 * 1024
        return min(cap, max(need, 32 * 1024 * 1024))

    # ---- small problems: single tile, no grid (no per-step bookkeeping) ----
    if num_tiles == 1:
        resident = (B_p * D_in * t_isize + weight_bytes
                    + B_p * D_out_p * out_isize)
        out_p = pl.pallas_call(
            kernel,
            out_shape=jax.ShapeDtypeStruct((B_p, D_out_p), out_dtype),
            cost_estimate=cost,
            compiler_params=pltpu.CompilerParams(
                vmem_limit_bytes=_vmem_limit(resident)),
        )(t_p, w1, b1, w2, b2)
        return out_p[:B, :D_out]

    # ---- large problems: tile B over a "parallel" grid axis ----------------
    # Weights/biases stay VMEM-resident (constant index_map); request single
    # buffering for them since the block never changes.
    resident = (2 * weight_bytes            # headroom even if fallback double-buffers
                + 2 * tile * D_in * t_isize
                + 2 * tile * D_out_p * out_isize)
    vmem_limit = _vmem_limit(resident)

    def _build(single_buffer_weights):
        wkw = ({"pipeline_mode": pl.Buffered(1)}
               if single_buffer_weights else {})
        grid_spec = pltpu.PrefetchScalarGridSpec(
            num_scalar_prefetch=0,
            grid=(num_tiles,),
            in_specs=[
                pl.BlockSpec((tile, D_in), lambda i: (i, 0)),
                pl.BlockSpec((D_in, H), lambda i: (0, 0), **wkw),
                pl.BlockSpec((1, H), lambda i: (0, 0), **wkw),
                pl.BlockSpec((H, D_out_p), lambda i: (0, 0), **wkw),
                pl.BlockSpec((1, D_out_p), lambda i: (0, 0), **wkw),
            ],
            out_specs=pl.BlockSpec((tile, D_out_p), lambda i: (i, 0)),
        )
        return pl.pallas_call(
            kernel,
            out_shape=jax.ShapeDtypeStruct((B_p, D_out_p), out_dtype),
            grid_spec=grid_spec,
            cost_estimate=cost,
            compiler_params=pltpu.CompilerParams(
                dimension_semantics=("parallel",),
                vmem_limit_bytes=vmem_limit),
        )

    try:
        out_p = _build(True)(t_p, w1, b1, w2, b2)
    except Exception:
        # pl.Buffered(1) unsupported on this jax version -> default buffering.
        out_p = _build(False)(t_p, w1, b1, w2, b2)
    return out_p[:B, :D_out]


# --------------------------------------------------------------------------
# Init + reference + self-test
# --------------------------------------------------------------------------
def init_params(key, input_dim, hidden_dim, output_dim):
    """nn.Linear-style init (U[-1/sqrt(fan_in), +]); weights are (in, out)."""
    k1, k2, k3, k4 = jax.random.split(key, 4)
    lim1 = 1.0 / jnp.sqrt(input_dim)
    lim2 = 1.0 / jnp.sqrt(hidden_dim)
    w1 = jax.random.uniform(k1, (input_dim, hidden_dim), jnp.float32, -lim1, lim1)
    b1 = jax.random.uniform(k2, (hidden_dim,), jnp.float32, -lim1, lim1)
    w2 = jax.random.uniform(k3, (hidden_dim, output_dim), jnp.float32, -lim2, lim2)
    b2 = jax.random.uniform(k4, (output_dim,), jnp.float32, -lim2, lim2)
    return w1, b1, w2, b2


def _reference(t, w1, b1, w2, b2):
    h = t @ w1 + b1
    h = h * jax.nn.sigmoid(h)
    return h @ w2 + b2


if __name__ == "__main__":
    input_dim, hidden_dim, output_dim = 32, 128, 64
    key = jax.random.PRNGKey(0)
    k_t, k_t2, k_t3, k_p = jax.random.split(key, 4)
    w1, b1, w2, b2 = init_params(k_p, input_dim, hidden_dim, output_dim)

    # One-time weight preparation (bf16 cast + lane padding), hoisted out of
    # the per-call path.
    params = prepare_params(w1, b1, w2, b2, weight_dtype=jnp.bfloat16)

    # --- small batch: no-grid fast path --------------------------------------
    t = jax.random.normal(k_t, (8, input_dim), jnp.float32)
    out = jax.block_until_ready(timestep_embedding(t, params))
    ref = _reference(t, w1, b1, w2, b2)
    assert out.shape == (8, output_dim)
    assert jnp.allclose(out, ref, atol=2e-2, rtol=2e-2)

    # --- larger batch: B-tiled "parallel" grid path (force tiling) -----------
    t2 = jax.random.normal(k_t2, (512, input_dim), jnp.float32)
    out2 = jax.block_until_ready(timestep_embedding(t2, params, tile_b=128))
    ref2 = _reference(t2, w1, b1, w2, b2)
    assert out2.shape == (512, output_dim)
    assert jnp.allclose(out2, ref2, atol=2e-2, rtol=2e-2)

    # --- awkward batch size: balanced-tile padding policy ---------------------
    t3 = jax.random.normal(k_t3, (300, input_dim), jnp.float32)
    out3 = jax.block_until_ready(timestep_embedding(t3, params, tile_b=128))
    ref3 = _reference(t3, w1, b1, w2, b2)
    assert out3.shape == (300, output_dim)
    assert jnp.allclose(out3, ref3, atol=2e-2, rtol=2e-2)

    # --- bf16 output path (halved writeback) ---------------------------------
    out4 = jax.block_until_ready(
        timestep_embedding(t, params, out_dtype=jnp.bfloat16))
    assert out4.dtype == jnp.bfloat16
    assert jnp.allclose(out4.astype(jnp.float32), ref, atol=5e-2, rtol=5e-2)

    print("KERNEL_OK")
</pallas_src>

<mosaic_0001>
module attributes {stable_mosaic.version = 11 : i64} {
  func.func @kernel(%arg0: memref<8x32xf32, #tpu.memory_space<vmem>>, %arg1: memref<32x128xbf16, #tpu.memory_space<vmem>>, %arg2: memref<1x128xf32, #tpu.memory_space<vmem>>, %arg3: memref<128x128xbf16, #tpu.memory_space<vmem>>, %arg4: memref<1x128xf32, #tpu.memory_space<vmem>>, %arg5: memref<8x128xf32, #tpu.memory_space<vmem>>) attributes {dimension_semantics = [], scalar_prefetch = 0 : i64, scratch_operands = 0 : i64, tpu.core_type = #tpu.core_type<tc>} {
    %c0 = arith.constant 0 : index
    %c0_0 = arith.constant 0 : index
    %0 = vector.load %arg0[%c0, %c0_0] : memref<8x32xf32, #tpu.memory_space<vmem>>, vector<8x32xf32>
    %c0_1 = arith.constant 0 : index
    %c0_2 = arith.constant 0 : index
    %1 = vector.load %arg1[%c0_1, %c0_2] : memref<32x128xbf16, #tpu.memory_space<vmem>>, vector<32x128xbf16>
    %cst = arith.constant dense<0.000000e+00> : vector<8x128xf32>
    %2 = tpu.matmul %0, %1, %cst {dimension_numbers = #tpu.dot_dimension_numbers<[1], [0], [0], [1], [0, 0, 1, 1], [], []>} : vector<8x32xf32>, vector<32x128xbf16>, vector<8x128xf32> -> vector<8x128xf32>
    %c0_3 = arith.constant 0 : index
    %c0_4 = arith.constant 0 : index
    %3 = vector.load %arg2[%c0_3, %c0_4] : memref<1x128xf32, #tpu.memory_space<vmem>>, vector<1x128xf32>
    %4 = vector.broadcast %3 : vector<1x128xf32> to vector<8x128xf32>
    %5 = arith.addf %2, %4 : vector<8x128xf32>
    %6 = arith.truncf %5 : vector<8x128xf32> to vector<8x128xbf16>
    %7 = arith.negf %6 : vector<8x128xbf16>
    %8 = math.exp %7 : vector<8x128xbf16>
    %cst_5 = arith.constant 1.000000e+00 : bf16
    %9 = vector.broadcast %cst_5 : bf16 to vector<8x128xbf16>
    %10 = arith.addf %9, %8 : vector<8x128xbf16>
    %11 = arith.divf %9, %10 : vector<8x128xbf16>
    %12 = arith.mulf %6, %11 : vector<8x128xbf16>
    %c0_6 = arith.constant 0 : index
    %c0_7 = arith.constant 0 : index
    %13 = vector.load %arg3[%c0_6, %c0_7] : memref<128x128xbf16, #tpu.memory_space<vmem>>, vector<128x128xbf16>
    %cst_8 = arith.constant dense<0.000000e+00> : vector<8x128xf32>
    %14 = tpu.matmul %12, %13, %cst_8 {dimension_numbers = #tpu.dot_dimension_numbers<[1], [0], [0], [1], [0, 0, 1, 1], [], []>} : vector<8x128xbf16>, vector<128x128xbf16>, vector<8x128xf32> -> vector<8x128xf32>
    %c0_9 = arith.constant 0 : index
    %c0_10 = arith.constant 0 : index
    %15 = vector.load %arg4[%c0_9, %c0_10] : memref<1x128xf32, #tpu.memory_space<vmem>>, vector<1x128xf32>
    %16 = vector.broadcast %15 : vector<1x128xf32> to vector<8x128xf32>
    %17 = arith.addf %14, %16 : vector<8x128xf32>
    %c0_11 = arith.constant 0 : index
    %c0_12 = arith.constant 0 : index
    %18 = vector.load %arg5[%c0_11, %c0_12] : memref<8x128xf32, #tpu.memory_space<vmem>>, vector<8x128xf32>
    tpu.vector_store %arg5[%c0_11, %c0_12], %17 {strides = array<i32>} : memref<8x128xf32, #tpu.memory_space<vmem>>, vector<8x128xf32>,
    return
  }
}

</mosaic_0001>

<llo_original>
// kernel: tpu_custom_call.1
$region0: #{tpu_custom_call.1}
  #allocation0 [shape = 'u32[]', space=smem, size = 0x4, offset = 0x4, fixed_abs, tag = 'smem constant byte address 0x4 - core index']
  #allocation1 [shape = 'u32[144,128]{1,0:T(1,128)}', space=vmem, size = 0x12000, scoped, tag = 'internal scratch']
  %s0 = inlined_call_operand.hbm [shape: f32[8,32], index: 0, kind: input, shape index: {}]
  %s1 = inlined_call_operand.hbm [shape: bf16[32,128], index: 1, kind: input, shape index: {}]
  %s2 = inlined_call_operand.vmem [shape: f32[1,128], index: 2, kind: input, shape index: {}]
  %s3 = inlined_call_operand.hbm [shape: bf16[128,128], index: 3, kind: input, shape index: {}]
  %s4 = inlined_call_operand.vmem [shape: f32[1,128], index: 4, kind: input, shape index: {}]
  %s5 = inlined_call_operand.hbm [shape: f32[8,128], index: 5, kind: output, shape index: {}]
  %s6 = sld [smem:[#allocation0]]
  $region42: #{tpu_custom_call.1} parent=0
    _
  %s8 = ssub.s32 1, %s6
  %s9 = scalar_select 0, %s8, %s6
  $region1: #{tpu_custom_call.1} parent=0
    #allocation2 [shape = 'u8[4096]{0}', space=vmem, size = 0x1000, scoped, tag = 'input window, operand 0, single buffered']
    #allocation3 [shape = 's32[1]{0}', space=sflag, size = 0x4, scoped, tag = 'scoped memory for tpu_custom_call.1']
    #allocation4 [shape = 's32[1]{0}', space=sflag, size = 0x4, scoped, tag = 'scoped memory for tpu_custom_call.1']
    #allocation5 [shape = 'u8[8192]{0}', space=vmem, size = 0x2000, scoped, tag = 'input window, operand 1, single buffered']
    #allocation6 [shape = 's32[1]{0}', space=sflag, size = 0x4, scoped, tag = 'scoped memory for tpu_custom_call.1']
    #allocation7 [shape = 'u8[32768]{0}', space=vmem, size = 0x8000, scoped, tag = 'input window, operand 3, single buffered']
    #allocation8 [shape = 'u8[4096]{0}', space=vmem, size = 0x1000, scoped, tag = 'output window, operand 0, single buffered']
    %10 = vsyncpa [#allocation3], 0
    %11 = vsyncpa [#allocation6], 0
    %12 = vsyncpa [#allocation4], 0
    // Predicated region
    $region2: #{tpu_custom_call.1} parent=1 // pred_check
      _
    $region3: #{tpu_custom_call.1} parent=1 // pred_check_branch
      %14 = sbr.rel (0) target = $region5
    $region4: #{tpu_custom_call.1} parent=1 // pred_region
      %s16 = ssub.s32 128, 128
      %17 = vsyncadd [#allocation3], %s16
      %s19 = sshll.u32 [#allocation2], 4
      %s20 = int_to_ptr.vmem [resolvable:$true] %s19
      %22 = dma.hbm_to_vmem [thread:$0]  %s0, 128, %s20, [#allocation3]
    $region5: #{tpu_custom_call.1} parent=1 // pred_fallthru
      _
    // Predicated region
    $region6: #{tpu_custom_call.1} parent=1 // pred_check
      _
    $region7: #{tpu_custom_call.1} parent=1 // pred_check_branch
      %24 = sbr.rel (0) target = $region9
    $region8: #{tpu_custom_call.1} parent=1 // pred_region
      %s26 = ssub.s32 256, 256
      %27 = vsyncadd [#allocation6], %s26
      %s28 = sshll.u32 [#allocation5], 4
      %s29 = int_to_ptr.vmem [resolvable:$true] %s28
      %34 = dma.hbm_to_vmem [thread:$0]  %s1, 256, %s29, [#allocation6], 64, 64, 4
    $region9: #{tpu_custom_call.1} parent=1 // pred_fallthru
      _
    // Predicated region
    $region10: #{tpu_custom_call.1} parent=1 // pred_check
      _
    $region11: #{tpu_custom_call.1} parent=1 // pred_check_branch
      %36 = sbr.rel (0) target = $region13
    $region12: #{tpu_custom_call.1} parent=1 // pred_region
      _
    $region13: #{tpu_custom_call.1} parent=1 // pred_fallthru
      _
    // Predicated region
    $region14: #{tpu_custom_call.1} parent=1 // pred_check
      _
    $region15: #{tpu_custom_call.1} parent=1 // pred_check_branch
      %38 = sbr.rel (0) target = $region17
    $region16: #{tpu_custom_call.1} parent=1 // pred_region
      %s40 = ssub.s32 1024, 1024
      %41 = vsyncadd [#allocation6], %s40
      %s42 = sshll.u32 [#allocation7], 4
      %s43 = int_to_ptr.vmem [resolvable:$true] %s42
      %48 = dma.hbm_to_vmem [thread:$0]  %s3, 1024, %s43, [#allocation6], 64, 64, 4
    $region17: #{tpu_custom_call.1} parent=1 // pred_fallthru
      _
    // Predicated region
    $region18: #{tpu_custom_call.1} parent=1 // pred_check
      _
    $region19: #{tpu_custom_call.1} parent=1 // pred_check_branch
      %50 = sbr.rel (0) target = $region21
    $region20: #{tpu_custom_call.1} parent=1 // pred_region
      _
    $region21: #{tpu_custom_call.1} parent=1 // pred_fallthru
      _
    // Predicated region
    $region22: #{tpu_custom_call.1} parent=1 // pred_check
      _
    $region23: #{tpu_custom_call.1} parent=1 // pred_check_branch
      %52 = sbr.rel (0) target = $region25
    $region24: #{tpu_custom_call.1} parent=1 // pred_region
      %53 = dma.done [#allocation3], 128
    $region25: #{tpu_custom_call.1} parent=1 // pred_fallthru
      _
    // Predicated region
    $region26: #{tpu_custom_call.1} parent=1 // pred_check
      _
    $region27: #{tpu_custom_call.1} parent=1 // pred_check_branch
      %55 = sbr.rel (0) target = $region29
    $region28: #{tpu_custom_call.1} parent=1 // pred_region
      %56 = dma.done [#allocation6], 256
    $region29: #{tpu_custom_call.1} parent=1 // pred_fallthru
      _
    // Predicated region
    $region30: #{tpu_custom_call.1} parent=1 // pred_check
      _
    $region31: #{tpu_custom_call.1} parent=1 // pred_check_branch
      %58 = sbr.rel (0) target = $region33
    $region32: #{tpu_custom_call.1} parent=1 // pred_region
      %59 = dma.done [#allocation6], 1024
    $region33: #{tpu_custom_call.1} parent=1 // pred_fallthru
      _
    %v62 = vld [vmem:[#allocation2] sm:$0xff]
    %v63 = vld [vmem:[#allocation5] sm:$0xf]
    %v64 = vld [vmem:[#allocation5 + $0x4] sm:$0xf]
    %v65 = vld [vmem:[#allocation5 + $0x8] sm:$0xf]
    %v66 = vld [vmem:[#allocation5 + $0xc] sm:$0xf]
    %v67 = vld [vmem:[%s2] sm:$0x1]
    %v69 = vlaneseq
    %v70 = vshrl.u32 %v69, 7
    %v71 = vsub.s32 0, %v70
    %v72 = vrot.slane %v67, %v71
    %v78 = vunpack.c.l.b16 %v63
    %v79 = vunpack.c.l.b16 %v64
    %v80 = vunpack.c.l.b16 %v65
    %v81 = vunpack.c.l.b16 %v66
    %v82 = vpack.c.b16 %v79, %v78
    %v83 = vpack.c.b16 %v81, %v80
    %vm86 = vcmask 261120
    %v88 = vsel %vm86, %v62, 0
    %90 = vmatprep.subr.bf16.mxu0 0
    %91 = vmatpush1.bf16.msra.mxu0 %v82
    %92 = vmatprep.subr.bf16.mxu0 0
    %93 = vmatpush1.bf16.msra.mxu0 %v83
    %94 = vmatprep.subr.bf16.mxu0 0
    %95 = vmatpush1.bf16.msra.mxu0 0
    %96 = vmatprep.subr.bf16.mxu0 0
    %97 = vmatpush1.bf16.msra.mxu0 0
    %98 = vmatprep.subr.bf16.mxu0 0
    %99 = vmatpush1.bf16.msra.mxu0 0
    %100 = vmatprep.subr.bf16.mxu0 0
    %101 = vmatpush1.bf16.msra.mxu0 0
    %102 = vmatprep.subr.bf16.mxu0 0
    %103 = vmatpush1.bf16.msra.mxu0 0
    %104 = vmatprep.subr.bf16.mxu0 0
    %105 = vmatpush1.bf16.msra.mxu0 0
    %106 = vmatprep.subr.bf16.mxu0 0
    %107 = vmatpush1.bf16.msra.mxu0 0
    %108 = vmatprep.subr.bf16.mxu0 0
    %109 = vmatpush1.bf16.msra.mxu0 0
    %110 = vmatprep.subr.bf16.mxu0 0
    %111 = vmatpush1.bf16.msra.mxu0 0
    %112 = vmatprep.subr.bf16.mxu0 0
    %113 = vmatpush1.bf16.msra.mxu0 0
    %114 = vmatprep.subr.bf16.mxu0 0
    %115 = vmatpush1.bf16.msra.mxu0 0
    %116 = vmatprep.subr.bf16.mxu0 0
    %117 = vmatpush1.bf16.msra.mxu0 0
    %118 = vmatprep.subr.bf16.mxu0 0
    %119 = vmatpush1.bf16.msra.mxu0 0
    %120 = vmatprep.subr.bf16.mxu0 0
    %121 = vmatpush1.bf16.msra.mxu0 0
    %122 = vmatprep.mubr.f32.mxu0 0.0
    %123 = vmatmul.mubr.f32.gmra.mrb[0].mxu0 %v88
    %v124 = vpop.f32.mrb[0].mxu0
    %v125 = vadd.f32 %v72, %v124
    %v126 = vpop.f32.mrb[0].mxu0
    %127 = vdwg.mxu0
    %v128 = vpack.c.bf16 %v125, %v125
    %v129 = vxor.u32 %v128, 2147516416
    %v131 = vmul.bf16 %v129, 1069105081
    %v132 = vpow.bf16.pop %v131
    %v133 = vadd.bf16 %v132, 1065369472
    %v134 = vrcp.bf16.pop %v133
    %v135 = vmul.bf16 1065369472, %v134
    %v136 = vmul.bf16 %v128, %v135
    %v137 = vld [vmem:[#allocation7] sm:$0xf]
    %v138 = vld [vmem:[#allocation7 + $0x4] sm:$0xf]
    %v139 = vld [vmem:[#allocation7 + $0x8] sm:$0xf]
    %v140 = vld [vmem:[#allocation7 + $0xc] sm:$0xf]
    %v141 = vld [vmem:[#allocation7 + $0x10] sm:$0xf]
    %v142 = vld [vmem:[#allocation7 + $0x14] sm:$0xf]
    %v143 = vld [vmem:[#allocation7 + $0x18] sm:$0xf]
    %v144 = vld [vmem:[#allocation7 + $0x1c] sm:$0xf]
    %v145 = vld [vmem:[#allocation7 + $0x20] sm:$0xf]
    %v146 = vld [vmem:[#allocation7 + $0x24] sm:$0xf]
    %v147 = vld [vmem:[#allocation7 + $0x28] sm:$0xf]
    %v148 = vld [vmem:[#allocation7 + $0x2c] sm:$0xf]
    %v149 = vld [vmem:[#allocation7 + $0x30] sm:$0xf]
    %v150 = vld [vmem:[#allocation7 + $0x34] sm:$0xf]
    %v151 = vld [vmem:[#allocation7 + $0x38] sm:$0xf]
    %v152 = vld [vmem:[#allocation7 + $0x3c] sm:$0xf]
    %v153 = vld [vmem:[%s4] sm:$0x1]
    %v155 = vlaneseq
    %v156 = vshrl.u32 %v155, 7
    %v157 = vsub.s32 0, %v156
    %v158 = vrot.slane %v153, %v157
    %v176 = vunpack.c.l.b16 %v137
    %v177 = vunpack.c.l.b16 %v138
    %v178 = vunpack.c.l.b16 %v139
    %v179 = vunpack.c.l.b16 %v140
    %v180 = vunpack.c.l.b16 %v141
    %v181 = vunpack.c.l.b16 %v142
    %v182 = vunpack.c.l.b16 %v143
    %v183 = vunpack.c.l.b16 %v144
    %v184 = vunpack.c.l.b16 %v145
    %v185 = vunpack.c.l.b16 %v146
    %v186 = vunpack.c.l.b16 %v147
    %v187 = vunpack.c.l.b16 %v148
    %v188 = vunpack.c.l.b16 %v149
    %v189 = vunpack.c.l.b16 %v150
    %v190 = vunpack.c.l.b16 %v151
    %v191 = vunpack.c.l.b16 %v152
    %v192 = vpack.c.b16 %v177, %v176
    %v193 = vpack.c.b16 %v179, %v178
    %v194 = vpack.c.b16 %v181, %v180
    %v195 = vpack.c.b16 %v183, %v182
    %v196 = vpack.c.b16 %v185, %v184
    %v197 = vpack.c.b16 %v187, %v186
    %v198 = vpack.c.b16 %v189, %v188
    %v199 = vpack.c.b16 %v191, %v190
    %208 = vmatprep.subr.bf16.mxu0 0
    %209 = vmatpush1.bf16.msra.mxu0 %v192
    %210 = vmatprep.subr.bf16.mxu0 0
    %211 = vmatpush1.bf16.msra.mxu0 %v193
    %212 = vmatprep.subr.bf16.mxu0 0
    %213 = vmatpush1.bf16.msra.mxu0 %v194
    %214 = vmatprep.subr.bf16.mxu0 0
    %215 = vmatpush1.bf16.msra.mxu0 %v195
    %216 = vmatprep.subr.bf16.mxu0 0
    %217 = vmatpush1.bf16.msra.mxu0 %v196
    %218 = vmatprep.subr.bf16.mxu0 0
    %219 = vmatpush1.bf16.msra.mxu0 %v197
    %220 = vmatprep.subr.bf16.mxu0 0
    %221 = vmatpush1.bf16.msra.mxu0 %v198
    %222 = vmatprep.subr.bf16.mxu0 0
    %223 = vmatpush1.bf16.msra.mxu0 %v199
    %224 = vmatprep.subr.bf16.mxu0 0
    %225 = vmatpush1.bf16.msra.mxu0 0
    %226 = vmatprep.subr.bf16.mxu0 0
    %227 = vmatpush1.bf16.msra.mxu0 0
    %228 = vmatprep.subr.bf16.mxu0 0
    %229 = vmatpush1.bf16.msra.mxu0 0
    %230 = vmatprep.subr.bf16.mxu0 0
    %231 = vmatpush1.bf16.msra.mxu0 0
    %232 = vmatprep.subr.bf16.mxu0 0
    %233 = vmatpush1.bf16.msra.mxu0 0
    %234 = vmatprep.subr.bf16.mxu0 0
    %235 = vmatpush1.bf16.msra.mxu0 0
    %236 = vmatprep.subr.bf16.mxu0 0
    %237 = vmatpush1.bf16.msra.mxu0 0
    %238 = vmatprep.subr.bf16.mxu0 0
    %239 = vmatpush1.bf16.msra.mxu0 0
    %240 = vmatprep.mubr.bf16.mxu0 0
    %241 = vmatmul.mubr.bf16.gmra.mrb[0].mxu0 %v136
    %v242 = vpop.f32.mrb[0].mxu0
    %v243 = vadd.f32 %v158, %v242
    %v244 = vpop.f32.mrb[0].mxu0
    %v245 = vpop.f32.mrb[0].mxu0
    %v246 = vpop.f32.mrb[0].mxu0
    %247 = vdwg.mxu0
    %248 = vst [vmem:[#allocation8] sm:$0xff] %v243
    // Predicated region
    $region34: #{tpu_custom_call.1} parent=1 // pred_check
      _
    $region35: #{tpu_custom_call.1} parent=1 // pred_check_branch
      %250 = sbr.rel (0) target = $region37
    $region36: #{tpu_custom_call.1} parent=1 // pred_region
      %s252 = ssub.s32 128, 128
      %253 = vsyncadd [#allocation4], %s252
      %s255 = sshll.u32 [#allocation8], 4
      %s256 = int_to_ptr.vmem [resolvable:$true] %s255
      %258 = dma.vmem_to_hbm [thread:$0]  %s256, 128, %s5, [#allocation4]
    $region37: #{tpu_custom_call.1} parent=1 // pred_fallthru
      _
    // Predicated region
    $region38: #{tpu_custom_call.1} parent=1 // pred_check
      _
    $region39: #{tpu_custom_call.1} parent=1 // pred_check_branch
      %260 = sbr.rel (0) target = $region41
    $region40: #{tpu_custom_call.1} parent=1 // pred_region
      %261 = dma.done [#allocation4], 128
    $region41: #{tpu_custom_call.1} parent=1 // pred_fallthru
      _
    %262 = vsyncpa [#allocation3], 1
    %263 = vsyncpa [#allocation6], 1
    %264 = vsyncpa [#allocation4], 1

</llo_original>
